<compile_context>
chip_gen: v7x
topology: tpu7x:2x2x1
jax: 0.10.0
libtpu: 0.0.40
codegen_flags: <defaults>
</compile_context>

<pallas_src>
import functools

import jax
import jax.numpy as jnp
from jax.experimental import pallas as pl
from jax.experimental.pallas import tpu as pltpu

_IN_F = 500
_OUT_F = 10

# Double-buffered feat (2 * 2048 * 500 * 4B ~= 8.2 MiB) + optional dropout
# mask buffers (another ~8.2 MiB) + resident W/bias + tiny output buffers
# stays well under the 32 MiB scoped-VMEM budget on every generation
# (including v7x, 64 MiB physical per TC).
_TILE_M_MAX = 2048
_VMEM_LIMIT_BYTES = 32 * 1024 * 1024


def _round_up(a: int, m: int) -> int:
    return (a + m - 1) // m * m


def _classifier_kernel(x_ref, *refs, training: bool):
    if training:
        mask_ref, w_ref, b_ref, o_ref = refs
    else:
        w_ref, b_ref, o_ref = refs

    # ReLU on the VPU, kept in f32 (v5e VPU has no bf16).
    x = jnp.maximum(x_ref[...], jnp.zeros((), x_ref.dtype))

    if training:
        # F.dropout(p=0.5): mask already carries the 1/(1-p) = 2 rescale.
        x = x * mask_ref[...]

    # fc2 on the MXU: cast to the weight dtype right before the dot
    # (enables the bf16 datapath when requested), accumulate in f32.
    acc = jnp.dot(x.astype(w_ref.dtype), w_ref[...],
                  preferred_element_type=jnp.float32)
    acc = acc + b_ref[...].astype(jnp.float32)
    o_ref[...] = acc.astype(o_ref.dtype)


def prepare_fc2_params(w, b, param_dtype=jnp.float32):
    """One-time fc2 parameter prep; hoist out of the per-step forward path."""
    w_t = jnp.asarray(w).astype(param_dtype).T           # (in_f, out_f)
    b2 = jnp.asarray(b, jnp.float32).reshape(1, -1)       # (1, out_f)
    return w_t, b2


def lenet_classifier_prepared(feat, w_t, b2, *, dropout_mask=None,
                              tile_m_max: int = _TILE_M_MAX):
    """Forward with pre-prepared params. dropout_mask=None -> eval mode."""
    n, in_f = feat.shape
    out_f = w_t.shape[1]
    training = dropout_mask is not None

    # Batch tile: multiple of 8 (sublane); aim for >=2 grid steps so v7x's two
    # TensorCores both get work (no-op on v5e/v6e).  No host-side padding --
    # the last partial tile is masked by Pallas (OOB rows computed, never
    # stored; nothing reduces across rows so that is safe).
    tile_m = max(8, min(tile_m_max, _round_up(pl.cdiv(n, 2), 8)))
    grid = (pl.cdiv(n, tile_m),)

    kernel = functools.partial(_classifier_kernel, training=training)

    in_specs = [pl.BlockSpec((tile_m, in_f), lambda i: (i, 0))]     # feat tile
    args = [feat]
    if training:
        in_specs.append(pl.BlockSpec((tile_m, in_f), lambda i: (i, 0)))  # mask
        args.append(dropout_mask)
    # W / bias: constant index_map -> grid-invariant, fetched once and kept
    # resident in VMEM across all batch tiles.
    in_specs.append(pl.BlockSpec((in_f, out_f), lambda i: (0, 0)))
    in_specs.append(pl.BlockSpec((1, out_f), lambda i: (0, 0)))
    args += [w_t, b2]

    out = pl.pallas_call(
        kernel,
        out_shape=jax.ShapeDtypeStruct((n, out_f), feat.dtype),
        grid_spec=pltpu.PrefetchScalarGridSpec(
            num_scalar_prefetch=0,
            grid=grid,
            in_specs=in_specs,
            out_specs=pl.BlockSpec((tile_m, out_f), lambda i: (i, 0)),
        ),
        compiler_params=pltpu.CompilerParams(
            dimension_semantics=("parallel",),          # megacore on v7x
            vmem_limit_bytes=_VMEM_LIMIT_BYTES,
        ),
    )(*args)
    return out


def lenet_classifier(feat, w, b, *, training: bool = False, dropout_rng=None,
                     param_dtype=jnp.float32, tile_m_max: int = _TILE_M_MAX):
    """LeNetClassifier forward.

    feat: (N, 500) activations.
    w:    (10, 500) fc2 weight in PyTorch layout.
    b:    (10,)     fc2 bias.
    """
    w_t, b2 = prepare_fc2_params(w, b, param_dtype)
    mask = None
    if training:
        if dropout_rng is None:
            dropout_rng = jax.random.PRNGKey(0)
        keep = jax.random.bernoulli(dropout_rng, 0.5, feat.shape)
        mask = keep.astype(feat.dtype) * jnp.asarray(2.0, feat.dtype)
    return lenet_classifier_prepared(feat, w_t, b2, dropout_mask=mask,
                                     tile_m_max=tile_m_max)


if __name__ == "__main__":
    key = jax.random.PRNGKey(0)
    k_x, k_w, k_b, k_d = jax.random.split(key, 4)

    N, IN_F, OUT_F = 2, _IN_F, _OUT_F          # fc2 = Linear(500, 10)
    feat = jax.random.normal(k_x, (N, IN_F), dtype=jnp.float32)

    # nn.Linear-style uniform init, PyTorch weight layout (out_f, in_f).
    bound = 1.0 / (IN_F ** 0.5)
    w = jax.random.uniform(k_w, (OUT_F, IN_F), jnp.float32, -bound, bound)
    b = jax.random.uniform(k_b, (OUT_F,), jnp.float32, -bound, bound)

    ref_eval = jnp.maximum(feat, 0.0) @ w.T + b      # eval mode: dropout = id

    # --- eval mode, f32 datapath ---------------------------------------------
    out = jax.block_until_ready(lenet_classifier(feat, w, b, training=False))
    assert out.shape == (N, OUT_F)
    assert jnp.allclose(out, ref_eval, atol=1e-2, rtol=1e-2), "f32 mismatch"

    # --- eval mode, bf16 weight / MXU datapath --------------------------------
    out_bf16 = jax.block_until_ready(
        lenet_classifier(feat, w, b, training=False, param_dtype=jnp.bfloat16))
    assert out_bf16.shape == (N, OUT_F)
    assert jnp.allclose(out_bf16, ref_eval, atol=5e-2, rtol=5e-2), "bf16 mismatch"

    # --- training mode: host-generated dropout mask -> exact reference --------
    out_tr = jax.block_until_ready(
        lenet_classifier(feat, w, b, training=True, dropout_rng=k_d))
    keep = jax.random.bernoulli(k_d, 0.5, feat.shape).astype(jnp.float32)
    ref_tr = (jnp.maximum(feat, 0.0) * keep * 2.0) @ w.T + b
    assert out_tr.shape == (N, OUT_F)
    assert jnp.allclose(out_tr, ref_tr, atol=1e-2, rtol=1e-2), "train mismatch"

    # --- partial-last-block path (N not a multiple of the batch tile) ---------
    N2 = 13
    feat2 = jax.random.normal(k_x, (N2, IN_F), dtype=jnp.float32)
    out2 = jax.block_until_ready(lenet_classifier(feat2, w, b, training=False))
    ref2 = jnp.maximum(feat2, 0.0) @ w.T + b
    assert out2.shape == (N2, OUT_F)
    assert jnp.allclose(out2, ref2, atol=1e-2, rtol=1e-2), "partial-block mismatch"

    print("KERNEL_OK")
</pallas_src>

<mosaic_0001>
module attributes {stable_mosaic.version = 11 : i64} {
  func.func @_classifier_kernel(%arg0: i32, %arg1: memref<8x500xf32, #tpu.memory_space<vmem>>, %arg2: memref<500x10xf32, #tpu.memory_space<vmem>>, %arg3: memref<1x10xf32, #tpu.memory_space<vmem>>, %arg4: memref<8x10xf32, #tpu.memory_space<vmem>>) attributes {dimension_semantics = [#tpu.dimension_semantics<parallel>], iteration_bounds = array<i64: 1>, scalar_prefetch = 0 : i64, scratch_operands = 0 : i64, tpu.core_type = #tpu.core_type<tc>, window_params = [{transform_indices = @transform_0, window_bounds = array<i64: 8, 500>}, {pipeline_mode = #tpu.pipeline_mode<synchronous>, transform_indices = @transform_1, window_bounds = array<i64: 500, 10>}, {pipeline_mode = #tpu.pipeline_mode<synchronous>, transform_indices = @transform_2, window_bounds = array<i64: 1, 10>}, {transform_indices = @transform_3, window_bounds = array<i64: 8, 10>}]} {
    %c0 = arith.constant 0 : index
    %c0_0 = arith.constant 0 : index
    %0 = vector.load %arg1[%c0, %c0_0] : memref<8x500xf32, #tpu.memory_space<vmem>>, vector<8x500xf32>
    %cst = arith.constant 0.000000e+00 : f32
    %1 = vector.broadcast %cst : f32 to vector<8x500xf32>
    %2 = arith.maximumf %0, %1 : vector<8x500xf32>
    %c0_1 = arith.constant 0 : index
    %c0_2 = arith.constant 0 : index
    %3 = vector.load %arg2[%c0_1, %c0_2] : memref<500x10xf32, #tpu.memory_space<vmem>>, vector<500x10xf32>
    %cst_3 = arith.constant dense<0.000000e+00> : vector<8x10xf32>
    %4 = tpu.matmul %2, %3, %cst_3 {dimension_numbers = #tpu.dot_dimension_numbers<[1], [0], [0], [1], [0, 0, 1, 1], [], []>} : vector<8x500xf32>, vector<500x10xf32>, vector<8x10xf32> -> vector<8x10xf32>
    %c0_4 = arith.constant 0 : index
    %c0_5 = arith.constant 0 : index
    %5 = vector.load %arg3[%c0_4, %c0_5] : memref<1x10xf32, #tpu.memory_space<vmem>>, vector<1x10xf32>
    %6 = vector.broadcast %5 : vector<1x10xf32> to vector<8x10xf32>
    %7 = arith.addf %4, %6 : vector<8x10xf32>
    %c0_6 = arith.constant 0 : index
    %c0_7 = arith.constant 0 : index
    %8 = vector.load %arg4[%c0_6, %c0_7] : memref<8x10xf32, #tpu.memory_space<vmem>>, vector<8x10xf32>
    tpu.vector_store %arg4[%c0_6, %c0_7], %7 {strides = array<i32>} : memref<8x10xf32, #tpu.memory_space<vmem>>, vector<8x10xf32>,
    return
  }
  func.func @transform_0(%arg0: i32) -> (i32, i32) {
    %c0_i32 = arith.constant 0 : i32
    %c0_i32_0 = arith.constant 0 : i32
    return %arg0, %c0_i32 : i32, i32
  }
  func.func @transform_1(%arg0: i32) -> (i32, i32) {
    %c0_i32 = arith.constant 0 : i32
    %c0_i32_0 = arith.constant 0 : i32
    %c0_i32_1 = arith.constant 0 : i32
    return %c0_i32, %c0_i32_0 : i32, i32
  }
  func.func @transform_2(%arg0: i32) -> (i32, i32) {
    %c0_i32 = arith.constant 0 : i32
    %c0_i32_0 = arith.constant 0 : i32
    %c0_i32_1 = arith.constant 0 : i32
    return %c0_i32, %c0_i32_0 : i32, i32
  }
  func.func @transform_3(%arg0: i32) -> (i32, i32) {
    %c0_i32 = arith.constant 0 : i32
    %c0_i32_0 = arith.constant 0 : i32
    return %arg0, %c0_i32 : i32, i32
  }
}

</mosaic_0001>

<llo_original>
// kernel: tpu_custom_call.1
$region0: #{tpu_custom_call.1}
  #allocation0 [shape = 'u32[]', space=smem, size = 0x4, offset = 0x4, fixed_abs, tag = 'smem constant byte address 0x4 - core index']
  #allocation1 [shape = 'u32[144,128]{1,0:T(1,128)}', space=vmem, size = 0x12000, scoped, tag = 'internal scratch']
  %s0 = inlined_call_operand.vmem [shape: f32[2,500], index: 0, kind: input, shape index: {}]
  %s1 = inlined_call_operand.vmem [shape: f32[500,10], index: 1, kind: input, shape index: {}]
  %s2 = inlined_call_operand.vmem [shape: f32[1,10], index: 2, kind: input, shape index: {}]
  %s3 = inlined_call_operand.hbm [shape: f32[2,10], index: 3, kind: output, shape index: {}]
  %s4 = sld [smem:[#allocation0]]
  $region22: #{tpu_custom_call.1} parent=0
    _
  %s6 = ssub.s32 1, %s4
  %s7 = scalar_select 0, %s6, %s4
  $region1: #{tpu_custom_call.1} parent=0
    #allocation2 [shape = 'u8[4096]{0}', space=vmem, size = 0x1000, scoped, tag = 'output window, operand 0, single buffered']
    #allocation3 [shape = 's32[1]{0}', space=sflag, size = 0x4, scoped, tag = 'scoped memory for tpu_custom_call.1']
    %8 = vsyncpa [#allocation3], 0
    // Predicated region
    $region2: #{tpu_custom_call.1} parent=1 // pred_check
      _
    $region3: #{tpu_custom_call.1} parent=1 // pred_check_branch
      %10 = sbr.rel (0) target = $region5
    $region4: #{tpu_custom_call.1} parent=1 // pred_region
      _
    $region5: #{tpu_custom_call.1} parent=1 // pred_fallthru
      _
    // Predicated region
    $region6: #{tpu_custom_call.1} parent=1 // pred_check
      _
    $region7: #{tpu_custom_call.1} parent=1 // pred_check_branch
      %12 = sbr.rel (0) target = $region9
    $region8: #{tpu_custom_call.1} parent=1 // pred_region
      _
    $region9: #{tpu_custom_call.1} parent=1 // pred_fallthru
      _
    // Predicated region
    $region10: #{tpu_custom_call.1} parent=1 // pred_check
      _
    $region11: #{tpu_custom_call.1} parent=1 // pred_check_branch
      %14 = sbr.rel (0) target = $region13
    $region12: #{tpu_custom_call.1} parent=1 // pred_region
      _
    $region13: #{tpu_custom_call.1} parent=1 // pred_fallthru
      _
    %v15 = vld [vmem:[%s0] sm:$0xff]
    %v16 = vld [vmem:[%s0 + $0x8] sm:$0xff]
    %v17 = vld [vmem:[%s0 + $0x10] sm:$0xff]
    %v18 = vld [vmem:[%s0 + $0x18] sm:$0xff]
    %v19 = vmax.f32 %v15, 0.0
    %v20 = vmax.f32 %v16, 0.0
    %v21 = vmax.f32 %v17, 0.0
    %v22 = vmax.f32 %v18, 0.0
    %v23 = vld [vmem:[%s1] sm:$0xff]
    %v24 = vld [vmem:[%s1 + $0x8] sm:$0xff]
    %v25 = vld [vmem:[%s1 + $0x10] sm:$0xff]
    %v26 = vld [vmem:[%s1 + $0x18] sm:$0xff]
    %v27 = vld [vmem:[%s1 + $0x20] sm:$0xff]
    %v28 = vld [vmem:[%s1 + $0x28] sm:$0xff]
    %v29 = vld [vmem:[%s1 + $0x30] sm:$0xff]
    %v30 = vld [vmem:[%s1 + $0x38] sm:$0xff]
    %v31 = vld [vmem:[%s1 + $0x40] sm:$0xff]
    %v32 = vld [vmem:[%s1 + $0x48] sm:$0xff]
    %v33 = vld [vmem:[%s1 + $0x50] sm:$0xff]
    %v34 = vld [vmem:[%s1 + $0x58] sm:$0xff]
    %v35 = vld [vmem:[%s1 + $0x60] sm:$0xff]
    %v36 = vld [vmem:[%s1 + $0x68] sm:$0xff]
    %v37 = vld [vmem:[%s1 + $0x70] sm:$0xff]
    %v38 = vld [vmem:[%s1 + $0x78] sm:$0xff]
    %v39 = vld [vmem:[%s1 + $0x80] sm:$0xff]
    %v40 = vld [vmem:[%s1 + $0x88] sm:$0xff]
    %v41 = vld [vmem:[%s1 + $0x90] sm:$0xff]
    %v42 = vld [vmem:[%s1 + $0x98] sm:$0xff]
    %v43 = vld [vmem:[%s1 + $0xa0] sm:$0xff]
    %v44 = vld [vmem:[%s1 + $0xa8] sm:$0xff]
    %v45 = vld [vmem:[%s1 + $0xb0] sm:$0xff]
    %v46 = vld [vmem:[%s1 + $0xb8] sm:$0xff]
    %v47 = vld [vmem:[%s1 + $0xc0] sm:$0xff]
    %v48 = vld [vmem:[%s1 + $0xc8] sm:$0xff]
    %v49 = vld [vmem:[%s1 + $0xd0] sm:$0xff]
    %v50 = vld [vmem:[%s1 + $0xd8] sm:$0xff]
    %v51 = vld [vmem:[%s1 + $0xe0] sm:$0xff]
    %v52 = vld [vmem:[%s1 + $0xe8] sm:$0xff]
    %v53 = vld [vmem:[%s1 + $0xf0] sm:$0xff]
    %v54 = vld [vmem:[%s1 + $0xf8] sm:$0xff]
    %v55 = vld [vmem:[%s1 + $0x100] sm:$0xff]
    %v56 = vld [vmem:[%s1 + $0x108] sm:$0xff]
    %v57 = vld [vmem:[%s1 + $0x110] sm:$0xff]
    %v58 = vld [vmem:[%s1 + $0x118] sm:$0xff]
    %v59 = vld [vmem:[%s1 + $0x120] sm:$0xff]
    %v60 = vld [vmem:[%s1 + $0x128] sm:$0xff]
    %v61 = vld [vmem:[%s1 + $0x130] sm:$0xff]
    %v62 = vld [vmem:[%s1 + $0x138] sm:$0xff]
    %v63 = vld [vmem:[%s1 + $0x140] sm:$0xff]
    %v64 = vld [vmem:[%s1 + $0x148] sm:$0xff]
    %v65 = vld [vmem:[%s1 + $0x150] sm:$0xff]
    %v66 = vld [vmem:[%s1 + $0x158] sm:$0xff]
    %v67 = vld [vmem:[%s1 + $0x160] sm:$0xff]
    %v68 = vld [vmem:[%s1 + $0x168] sm:$0xff]
    %v69 = vld [vmem:[%s1 + $0x170] sm:$0xff]
    %v70 = vld [vmem:[%s1 + $0x178] sm:$0xff]
    %v71 = vld [vmem:[%s1 + $0x180] sm:$0xff]
    %v72 = vld [vmem:[%s1 + $0x188] sm:$0xff]
    %v73 = vld [vmem:[%s1 + $0x190] sm:$0xff]
    %v74 = vld [vmem:[%s1 + $0x198] sm:$0xff]
    %v75 = vld [vmem:[%s1 + $0x1a0] sm:$0xff]
    %v76 = vld [vmem:[%s1 + $0x1a8] sm:$0xff]
    %v77 = vld [vmem:[%s1 + $0x1b0] sm:$0xff]
    %v78 = vld [vmem:[%s1 + $0x1b8] sm:$0xff]
    %v79 = vld [vmem:[%s1 + $0x1c0] sm:$0xff]
    %v80 = vld [vmem:[%s1 + $0x1c8] sm:$0xff]
    %v81 = vld [vmem:[%s1 + $0x1d0] sm:$0xff]
    %v82 = vld [vmem:[%s1 + $0x1d8] sm:$0xff]
    %v83 = vld [vmem:[%s1 + $0x1e0] sm:$0xff]
    %v84 = vld [vmem:[%s1 + $0x1e8] sm:$0xff]
    %v85 = vld [vmem:[%s1 + $0x1f0] sm:$0xf]
    %v86 = vld [vmem:[%s2] sm:$0x1]
    %v88 = vlaneseq
    %v89 = vshrl.u32 %v88, 7
    %v90 = vsub.s32 0, %v89
    %v91 = vrot.slane %v86, %v90
    %v97 = vcombine.low %v19, %v20
    %v98 = vcombine.high %v19, %v20
    %v99 = vcombine.low %v21, %v22
    %v100 = vcombine.high %v21, %v22
    %v102 = vunpack.c.l.s4 1983009808
    %v103 = vunpack.c.0.s8 %v102
    %v104 = vlaneseq
    %v105 = vshrl.u32 %v104, 7
    %v106 = vsub.s32 %v103, %v105
    %v107 = vrot.slane %v97, %v106
    %v109 = vunpack.c.l.s4 1983009808
    %v110 = vunpack.c.0.s8 %v109
    %v111 = vlaneseq
    %v112 = vshrl.u32 %v111, 7
    %v113 = vsub.s32 %v110, %v112
    %v114 = vrot.slane %v98, %v113
    %v116 = vunpack.c.l.s4 1983009808
    %v117 = vunpack.c.0.s8 %v116
    %v118 = vlaneseq
    %v119 = vshrl.u32 %v118, 7
    %v120 = vsub.s32 %v117, %v119
    %v121 = vrot.slane %v99, %v120
    %v123 = vunpack.c.l.s4 1983009808
    %v124 = vunpack.c.0.s8 %v123
    %v125 = vlaneseq
    %v126 = vshrl.u32 %v125, 7
    %v127 = vsub.s32 %v124, %v126
    %v128 = vrot.slane %v100, %v127
    %v129 = vcombine.low %v107, %v121
    %v130 = vcombine.high %v107, %v121
    %v131 = vcombine.low %v114, %v128
    %v132 = vcombine.high %v114, %v128
    %vm136 = vcmask 949248
    %v137 = vsel %vm136, %v132, 0
    %vm139 = vcmask 1043456
    %v141 = vsel %vm139, %v85, 0
    %143 = vmatprep.subr.mxu0 0.0
    %144 = vmatpush1.msra.mxu0 %v23
    %145 = vmatprep.subr.mxu0 0.0
    %146 = vmatpush1.msra.mxu0 %v24
    %147 = vmatprep.subr.mxu0 0.0
    %148 = vmatpush1.msra.mxu0 %v25
    %149 = vmatprep.subr.mxu0 0.0
    %150 = vmatpush1.msra.mxu0 %v26
    %151 = vmatprep.subr.mxu0 0.0
    %152 = vmatpush1.msra.mxu0 %v27
    %153 = vmatprep.subr.mxu0 0.0
    %154 = vmatpush1.msra.mxu0 %v28
    %155 = vmatprep.subr.mxu0 0.0
    %156 = vmatpush1.msra.mxu0 %v29
    %157 = vmatprep.subr.mxu0 0.0
    %158 = vmatpush1.msra.mxu0 %v30
    %159 = vmatprep.subr.mxu0 0.0
    %160 = vmatpush1.msra.mxu0 %v31
    %161 = vmatprep.subr.mxu0 0.0
    %162 = vmatpush1.msra.mxu0 %v32
    %163 = vmatprep.subr.mxu0 0.0
    %164 = vmatpush1.msra.mxu0 %v33
    %165 = vmatprep.subr.mxu0 0.0
    %166 = vmatpush1.msra.mxu0 %v34
    %167 = vmatprep.subr.mxu0 0.0
    %168 = vmatpush1.msra.mxu0 %v35
    %169 = vmatprep.subr.mxu0 0.0
    %170 = vmatpush1.msra.mxu0 %v36
    %171 = vmatprep.subr.mxu0 0.0
    %172 = vmatpush1.msra.mxu0 %v37
    %173 = vmatprep.subr.mxu0 0.0
    %174 = vmatpush1.msra.mxu0 %v38
    %175 = vmatprep.subr.mxu0 0.0
    %176 = vmatpush1.msra.mxu0 %v39
    %177 = vmatprep.subr.mxu0 0.0
    %178 = vmatpush1.msra.mxu0 %v40
    %179 = vmatprep.subr.mxu0 0.0
    %180 = vmatpush1.msra.mxu0 %v41
    %181 = vmatprep.subr.mxu0 0.0
    %182 = vmatpush1.msra.mxu0 %v42
    %183 = vmatprep.subr.mxu0 0.0
    %184 = vmatpush1.msra.mxu0 %v43
    %185 = vmatprep.subr.mxu0 0.0
    %186 = vmatpush1.msra.mxu0 %v44
    %187 = vmatprep.subr.mxu0 0.0
    %188 = vmatpush1.msra.mxu0 %v45
    %189 = vmatprep.subr.mxu0 0.0
    %190 = vmatpush1.msra.mxu0 %v46
    %191 = vmatprep.subr.mxu0 0.0
    %192 = vmatpush1.msra.mxu0 %v47
    %193 = vmatprep.subr.mxu0 0.0
    %194 = vmatpush1.msra.mxu0 %v48
    %195 = vmatprep.subr.mxu0 0.0
    %196 = vmatpush1.msra.mxu0 %v49
    %197 = vmatprep.subr.mxu0 0.0
    %198 = vmatpush1.msra.mxu0 %v50
    %199 = vmatprep.subr.mxu0 0.0
    %200 = vmatpush1.msra.mxu0 %v51
    %201 = vmatprep.subr.mxu0 0.0
    %202 = vmatpush1.msra.mxu0 %v52
    %203 = vmatprep.subr.mxu0 0.0
    %204 = vmatpush1.msra.mxu0 %v53
    %205 = vmatprep.subr.mxu0 0.0
    %206 = vmatpush1.msra.mxu0 %v54
    %207 = vmatprep.mubr.f32.mxu0 %v130
    %208 = vmatmul.mubr.f32.gmra.mrb[0].mxu0 %v129
    %v209 = vpop.f32.mrb[0].mxu0
    %v210 = vadd.f32 %v91, %v209
    %v211 = vpop.f32.mrb[0].mxu0
    %212 = vdwg.mxu0
    %213 = vmatprep.subr.mxu0 0.0
    %214 = vmatpush1.msra.mxu0 %v55
    %215 = vmatprep.subr.mxu0 0.0
    %216 = vmatpush1.msra.mxu0 %v56
    %217 = vmatprep.subr.mxu0 0.0
    %218 = vmatpush1.msra.mxu0 %v57
    %219 = vmatprep.subr.mxu0 0.0
    %220 = vmatpush1.msra.mxu0 %v58
    %221 = vmatprep.subr.mxu0 0.0
    %222 = vmatpush1.msra.mxu0 %v59
    %223 = vmatprep.subr.mxu0 0.0
    %224 = vmatpush1.msra.mxu0 %v60
    %225 = vmatprep.subr.mxu0 0.0
    %226 = vmatpush1.msra.mxu0 %v61
    %227 = vmatprep.subr.mxu0 0.0
    %228 = vmatpush1.msra.mxu0 %v62
    %229 = vmatprep.subr.mxu0 0.0
    %230 = vmatpush1.msra.mxu0 %v63
    %231 = vmatprep.subr.mxu0 0.0
    %232 = vmatpush1.msra.mxu0 %v64
    %233 = vmatprep.subr.mxu0 0.0
    %234 = vmatpush1.msra.mxu0 %v65
    %235 = vmatprep.subr.mxu0 0.0
    %236 = vmatpush1.msra.mxu0 %v66
    %237 = vmatprep.subr.mxu0 0.0
    %238 = vmatpush1.msra.mxu0 %v67
    %239 = vmatprep.subr.mxu0 0.0
    %240 = vmatpush1.msra.mxu0 %v68
    %241 = vmatprep.subr.mxu0 0.0
    %242 = vmatpush1.msra.mxu0 %v69
    %243 = vmatprep.subr.mxu0 0.0
    %244 = vmatpush1.msra.mxu0 %v70
    %245 = vmatprep.subr.mxu0 0.0
    %246 = vmatpush1.msra.mxu0 %v71
    %247 = vmatprep.subr.mxu0 0.0
    %248 = vmatpush1.msra.mxu0 %v72
    %249 = vmatprep.subr.mxu0 0.0
    %250 = vmatpush1.msra.mxu0 %v73
    %251 = vmatprep.subr.mxu0 0.0
    %252 = vmatpush1.msra.mxu0 %v74
    %253 = vmatprep.subr.mxu0 0.0
    %254 = vmatpush1.msra.mxu0 %v75
    %255 = vmatprep.subr.mxu0 0.0
    %256 = vmatpush1.msra.mxu0 %v76
    %257 = vmatprep.subr.mxu0 0.0
    %258 = vmatpush1.msra.mxu0 %v77
    %259 = vmatprep.subr.mxu0 0.0
    %260 = vmatpush1.msra.mxu0 %v78
    %261 = vmatprep.subr.mxu0 0.0
    %262 = vmatpush1.msra.mxu0 %v79
    %263 = vmatprep.subr.mxu0 0.0
    %264 = vmatpush1.msra.mxu0 %v80
    %265 = vmatprep.subr.mxu0 0.0
    %266 = vmatpush1.msra.mxu0 %v81
    %267 = vmatprep.subr.mxu0 0.0
    %268 = vmatpush1.msra.mxu0 %v82
    %269 = vmatprep.subr.mxu0 0.0
    %270 = vmatpush1.msra.mxu0 %v83
    %271 = vmatprep.subr.mxu0 0.0
    %272 = vmatpush1.msra.mxu0 %v84
    %273 = vmatprep.subr.mxu0 0.0
    %274 = vmatpush1.msra.mxu0 %v141
    %275 = vmatprep.subr.mxu0 0.0
    %276 = vmatpush1.msra.mxu0 0.0
    %277 = vmatprep.mubr.f32.mxu0 %v137
    %278 = vmatmul.mubr.f32.gmra.mrb[0].mxu0 %v131
    %v279 = vpop.f32.mrb[0].mxu0
    %v280 = vadd.f32 %v210, %v279
    %v281 = vpop.f32.mrb[0].mxu0
    %282 = vdwg.mxu0
    %vm283 = vcmask 80896
    %284 = vst.msk [vmem:[#allocation2] sm:$0xff] %vm283, %v280
    // Predicated region
    $region14: #{tpu_custom_call.1} parent=1 // pred_check
      _
    $region15: #{tpu_custom_call.1} parent=1 // pred_check_branch
      %286 = sbr.rel (0) target = $region17
    $region16: #{tpu_custom_call.1} parent=1 // pred_region
      %s288 = ssub.s32 128, 32
      %289 = vsyncadd [#allocation3], %s288
      %s290 = sshll.u32 [#allocation2], 4
      %s291 = int_to_ptr.vmem [resolvable:$true] %s290
      %296 = dma.vmem_to_hbm [thread:$0]  %s291, 32, %s3, [#allocation3], 32, 32, 2
    $region17: #{tpu_custom_call.1} parent=1 // pred_fallthru
      _
    // Predicated region
    $region18: #{tpu_custom_call.1} parent=1 // pred_check
      _
    $region19: #{tpu_custom_call.1} parent=1 // pred_check_branch
      %298 = sbr.rel (0) target = $region21
    $region20: #{tpu_custom_call.1} parent=1 // pred_region
      %299 = dma.done [#allocation3], 128
    $region21: #{tpu_custom_call.1} parent=1 // pred_fallthru
      _
    %300 = vsyncpa [#allocation3], 1

</llo_original>
